<compile_context>
chip_gen: v6e
topology: v6e:2x2x1
jax: 0.10.0
libtpu: 0.0.40
codegen_flags: <defaults>
</compile_context>

<pallas_src>
import functools

import jax
import jax.numpy as jnp
from jax.experimental import pallas as pl
from jax.experimental.pallas import tpu as pltpu


# ----------------------------- helpers ------------------------------------
def _round_up(x, m):
    return ((x + m - 1) // m) * m


def _layernorm(x, w, b, eps=1e-5):
    mu = jnp.mean(x, axis=-1, keepdims=True)
    var = jnp.mean((x - mu) ** 2, axis=-1, keepdims=True)
    return (x - mu) * jax.lax.rsqrt(var + eps) * w + b


# ----------------------------- initial linear -----------------------------
def _linear_kernel(x_ref, w_ref, b_ref, o_ref):
    x = x_ref[...].astype(w_ref.dtype)
    o_ref[...] = (
        jnp.dot(x, w_ref[...], preferred_element_type=jnp.float32) + b_ref[...]
    ).astype(o_ref.dtype)


def pallas_linear(x2d, w, b2d, *, block_rows=256):
    """x2d: (M, Din) @ w: (Din, Dout) + b2d: (1, Dout) -> (M, Dout) float32.

    Gridded over row tiles (pipelined) instead of loading all of M at once.
    """
    M, Din = x2d.shape
    Dout = w.shape[1]
    tm = min(block_rows, _round_up(M, 8))
    mp = _round_up(M, tm)
    if mp != M:
        x2d = jnp.pad(x2d, ((0, mp - M), (0, 0)))
    out = pl.pallas_call(
        _linear_kernel,
        out_shape=jax.ShapeDtypeStruct((mp, Dout), jnp.float32),
        grid=(mp // tm,),
        in_specs=[
            pl.BlockSpec((tm, Din), lambda i: (i, 0)),
            pl.BlockSpec((Din, Dout), lambda i: (0, 0)),
            pl.BlockSpec((1, Dout), lambda i: (0, 0)),
        ],
        out_specs=pl.BlockSpec((tm, Dout), lambda i: (i, 0)),
        compiler_params=pltpu.CompilerParams(
            dimension_semantics=("parallel",),
            vmem_limit_bytes=int(48 * 1024 * 1024),
        ),
    )(x2d, w, b2d)
    return out[:M]


# ----------------------------- transformer layer ---------------------------
def transformer_layer_kernel(
    x_ref, ln1w_ref, ln1b_ref, wq_ref, wkv_ref, wp_ref, bp_ref,
    ln2w_ref, ln2b_ref, w1_ref, b1_ref, w2_ref, b2_ref,
    o_ref, attn_ref, *, num_heads,
):
    TB, S, D = x_ref.shape
    dh = D // num_heads
    scale = dh ** (-0.5)
    cd = wq_ref.dtype                        # matmul compute dtype (f32 or bf16)

    x = x_ref[...].reshape(TB * S, D)        # residual stream, f32, (TB*S, D)

    # ---- attention block (pre-norm, residual) ----
    h = _layernorm(x, ln1w_ref[...], ln1b_ref[...]).astype(cd)
    q = jnp.dot(h, wq_ref[...], preferred_element_type=jnp.float32)    # (TB*S, D)
    kv = jnp.dot(h, wkv_ref[...], preferred_element_type=jnp.float32)  # (TB*S, 2D)
    q3 = q.reshape(TB, S, D)
    k3 = kv[:, :D].reshape(TB, S, D)
    v3 = kv[:, D:].reshape(TB, S, D)

    # Per-head, batched over the TB sequences in this block (single-batch-dim
    # einsums, like flash-attention).  Head outputs are written directly into a
    # VMEM scratch slab (no lane-axis concatenate, fewer live temporaries).
    for hd in range(num_heads):
        sl = slice(hd * dh, (hd + 1) * dh)
        qh = q3[:, :, sl].astype(cd)          # (TB, S, dh)
        kh = k3[:, :, sl].astype(cd)
        vh = v3[:, :, sl].astype(cd)
        s = jnp.einsum("bnd,bmd->bnm", qh, kh,
                       preferred_element_type=jnp.float32) * scale      # (TB, S, S)
        s = s - jnp.max(s, axis=-1, keepdims=True)
        p = jnp.exp(s)
        p = p * pl.reciprocal(jnp.sum(p, axis=-1, keepdims=True), approx=True)
        oh = jnp.einsum("bnm,bmd->bnd", p.astype(cd), vh,
                        preferred_element_type=jnp.float32)             # (TB, S, dh)
        attn_ref[:, :, sl] = oh

    attn = attn_ref[...].reshape(TB * S, D).astype(cd)
    x = x + (jnp.dot(attn, wp_ref[...], preferred_element_type=jnp.float32)
             + bp_ref[...])

    # ---- MLP block (pre-norm, residual) ----
    h2 = _layernorm(x, ln2w_ref[...], ln2b_ref[...]).astype(cd)
    m = jnp.dot(h2, w1_ref[...], preferred_element_type=jnp.float32) + b1_ref[...]
    m = jnp.maximum(m, 0.0).astype(cd)
    m = jnp.dot(m, w2_ref[...], preferred_element_type=jnp.float32) + b2_ref[...]
    x = x + m

    o_ref[...] = x.reshape(TB, S, D)


def pallas_transformer_layer(x_seq, p, num_heads, *, block_seqs, compute_dtype):
    BN, S, D = x_seq.shape
    TB = max(1, min(block_seqs, BN))
    BNp = _round_up(BN, TB)
    if BNp != BN:
        # Zero-padding extra sequences is numerically safe (LayerNorm of zeros
        # is finite); padded rows are sliced off below.
        x_seq = jnp.pad(x_seq, ((0, BNp - BN), (0, 0), (0, 0)))
    H4 = p["w1"].shape[1]
    cd = compute_dtype

    def fixed(shape):
        nd = len(shape)
        return pl.BlockSpec(shape, lambda i, _nd=nd: (0,) * _nd)

    kernel = functools.partial(transformer_layer_kernel, num_heads=num_heads)
    out = pl.pallas_call(
        kernel,
        out_shape=jax.ShapeDtypeStruct((BNp, S, D), jnp.float32),
        grid=(BNp // TB,),
        in_specs=[
            pl.BlockSpec((TB, S, D), lambda i: (i, 0, 0)),  # x (residual, f32)
            fixed((1, D)),          # ln1 weight
            fixed((1, D)),          # ln1 bias
            fixed((D, D)),          # Wq (no bias)
            fixed((D, 2 * D)),      # Wkv (no bias)
            fixed((D, D)),          # W project
            fixed((1, D)),          # b project
            fixed((1, D)),          # ln2 weight
            fixed((1, D)),          # ln2 bias
            fixed((D, H4)),         # W fc1
            fixed((1, H4)),         # b fc1
            fixed((H4, D)),         # W fc2
            fixed((1, D)),          # b fc2
        ],
        out_specs=pl.BlockSpec((TB, S, D), lambda i: (i, 0, 0)),
        scratch_shapes=[pltpu.VMEM((TB, S, D), jnp.float32)],  # head accumulator
        compiler_params=pltpu.CompilerParams(
            dimension_semantics=("parallel",),
            vmem_limit_bytes=int(48 * 1024 * 1024),
        ),
    )(
        x_seq,
        p["ln1_w"], p["ln1_b"],
        p["wq"].astype(cd), p["wkv"].astype(cd), p["wp"].astype(cd), p["bp"],
        p["ln2_w"], p["ln2_b"],
        p["w1"].astype(cd), p["b1"], p["w2"].astype(cd), p["b2"],
    )
    return out[:BN]


# ----------------------------- full module forward --------------------------
def transformer_mapper_forward(x, params, num_heads=8, *,
                               compute_dtype=jnp.float32, block_seqs=None):
    B, N, K, D = x.shape
    P = params["cls_token"].shape[0]
    S = K + P
    if block_seqs is None:
        block_seqs = max(1, 256 // S)       # aim for ~256-row matmul slabs

    # x.view(B*N*K, D) -> linear -> view back
    x2d = x.reshape(B * N * K, D)
    x2d = pallas_linear(x2d, params["lin_w"].astype(compute_dtype), params["lin_b"])
    xproj = x2d.reshape(B, N, K, D)

    # prefix = cat((x, cls_token expanded), dim=-2)
    cls = jnp.broadcast_to(params["cls_token"][None, None], (B, N, P, D))
    prefix = jnp.concatenate([xproj, cls], axis=2)          # (B, N, K+P, D)
    seq = prefix.reshape(B * N, S, D)

    for lp in params["layers"]:
        seq = pallas_transformer_layer(seq, lp, num_heads,
                                       block_seqs=block_seqs,
                                       compute_dtype=compute_dtype)

    out = seq.reshape(B, N, S, D)
    # Note: a specialized last-layer kernel computing only the final token
    # (q = last row) would save ~(1 - 1/S) of the last layer's FLOPs; omitted
    # here to keep a single, well-tested layer kernel.
    return out[:, :, -1:]                                   # (B, N, 1, D)


# ----------------------------- pure-JAX reference ---------------------------
def _ref_layer(x, p, num_heads):
    BN, S, D = x.shape
    dh = D // num_heads
    scale = dh ** (-0.5)
    h = _layernorm(x, p["ln1_w"][0], p["ln1_b"][0])
    q = (h @ p["wq"]).reshape(BN, S, num_heads, dh)
    kv = (h @ p["wkv"]).reshape(BN, S, 2, num_heads, dh)
    k, v = kv[:, :, 0], kv[:, :, 1]
    att = jnp.einsum("bnhd,bmhd->bnmh", q, k) * scale
    att = jax.nn.softmax(att, axis=2)
    out = jnp.einsum("bnmh,bmhd->bnhd", att, v).reshape(BN, S, D)
    out = out @ p["wp"] + p["bp"][0]
    x = x + out
    h2 = _layernorm(x, p["ln2_w"][0], p["ln2_b"][0])
    m = jnp.maximum(h2 @ p["w1"] + p["b1"][0], 0.0) @ p["w2"] + p["b2"][0]
    return x + m


def reference_forward(x, params, num_heads=8):
    B, N, K, D = x.shape
    P = params["cls_token"].shape[0]
    x2d = x.reshape(B * N * K, D) @ params["lin_w"] + params["lin_b"][0]
    xproj = x2d.reshape(B, N, K, D)
    cls = jnp.broadcast_to(params["cls_token"][None, None], (B, N, P, D))
    seq = jnp.concatenate([xproj, cls], axis=2).reshape(B * N, K + P, D)
    for lp in params["layers"]:
        seq = _ref_layer(seq, lp, num_heads)
    return seq.reshape(B, N, K + P, D)[:, :, -1:]


# ----------------------------- params --------------------------------------
def init_params(key, dim, prefix_length, num_layers):
    keys = jax.random.split(key, 3 + num_layers)
    params = {
        "lin_w": 0.05 * jax.random.normal(keys[0], (dim, dim), jnp.float32),
        "lin_b": 0.05 * jax.random.normal(keys[1], (1, dim), jnp.float32),
        "cls_token": jax.random.normal(keys[2], (prefix_length, dim), jnp.float32),
        "layers": [],
    }
    for li in range(num_layers):
        lk = jax.random.split(keys[3 + li], 10)
        d4 = 4 * dim
        params["layers"].append({
            "ln1_w": jnp.ones((1, dim), jnp.float32)
                     + 0.1 * jax.random.normal(lk[0], (1, dim), jnp.float32),
            "ln1_b": 0.1 * jax.random.normal(lk[1], (1, dim), jnp.float32),
            "wq":  0.05 * jax.random.normal(lk[2], (dim, dim), jnp.float32),
            "wkv": 0.05 * jax.random.normal(lk[3], (dim, 2 * dim), jnp.float32),
            "wp":  0.05 * jax.random.normal(lk[4], (dim, dim), jnp.float32),
            "bp":  0.05 * jax.random.normal(lk[5], (1, dim), jnp.float32),
            "ln2_w": jnp.ones((1, dim), jnp.float32)
                     + 0.1 * jax.random.normal(lk[6], (1, dim), jnp.float32),
            "ln2_b": 0.1 * jax.random.normal(lk[7], (1, dim), jnp.float32),
            "w1": 0.05 * jax.random.normal(lk[8], (dim, d4), jnp.float32),
            "b1": jnp.zeros((1, d4), jnp.float32),
            "w2": 0.05 * jax.random.normal(lk[9], (d4, dim), jnp.float32),
            "b2": jnp.zeros((1, dim), jnp.float32),
        })
    return params


# ----------------------------- main -----------------------------------------
if __name__ == "__main__":
    B, N, K, D = 2, 2, 4, 32          # dim = 32, 8 heads -> head_dim = 4
    PREFIX_LEN = 4
    NUM_LAYERS = 2                    # small, but same per-layer structure

    key = jax.random.PRNGKey(0)
    kx, kp = jax.random.split(key)
    x = jax.random.normal(kx, (B, N, K, D), jnp.float32)
    params = init_params(kp, D, PREFIX_LEN, NUM_LAYERS)

    ref = jax.block_until_ready(reference_forward(x, params))

    # float32 matmul path (tight check; only approx softmax reciprocal differs)
    out = jax.block_until_ready(
        transformer_mapper_forward(x, params, compute_dtype=jnp.float32))
    assert out.shape == (B, N, 1, D), out.shape
    assert jnp.allclose(out, ref, rtol=5e-3, atol=5e-3), (
        float(jnp.max(jnp.abs(out - ref))))

    # bfloat16 matmul path (recommended on v6e/v7x); looser tolerance vs f32 ref
    out_bf16 = jax.block_until_ready(
        transformer_mapper_forward(x, params, compute_dtype=jnp.bfloat16))
    assert out_bf16.shape == (B, N, 1, D), out_bf16.shape
    assert jnp.allclose(out_bf16, ref, rtol=5e-2, atol=5e-2), (
        float(jnp.max(jnp.abs(out_bf16 - ref))))

    print("KERNEL_OK")
</pallas_src>

<mosaic_0001>
module attributes {stable_mosaic.version = 11 : i64} {
  func.func @_linear_kernel(%arg0: i32, %arg1: memref<16x32xf32, #tpu.memory_space<vmem>>, %arg2: memref<32x32xf32, #tpu.memory_space<vmem>>, %arg3: memref<1x32xf32, #tpu.memory_space<vmem>>, %arg4: memref<16x32xf32, #tpu.memory_space<vmem>>) attributes {dimension_semantics = [#tpu.dimension_semantics<parallel>], iteration_bounds = array<i64: 1>, scalar_prefetch = 0 : i64, scratch_operands = 0 : i64, tpu.core_type = #tpu.core_type<tc>, window_params = [{transform_indices = @transform_0, window_bounds = array<i64: 16, 32>}, {pipeline_mode = #tpu.pipeline_mode<synchronous>, transform_indices = @transform_1, window_bounds = array<i64: 32, 32>}, {pipeline_mode = #tpu.pipeline_mode<synchronous>, transform_indices = @transform_2, window_bounds = array<i64: 1, 32>}, {transform_indices = @transform_3, window_bounds = array<i64: 16, 32>}]} {
    %c0 = arith.constant 0 : index
    %c0_0 = arith.constant 0 : index
    %0 = vector.load %arg1[%c0, %c0_0] : memref<16x32xf32, #tpu.memory_space<vmem>>, vector<16x32xf32>
    %c0_1 = arith.constant 0 : index
    %c0_2 = arith.constant 0 : index
    %1 = vector.load %arg2[%c0_1, %c0_2] : memref<32x32xf32, #tpu.memory_space<vmem>>, vector<32x32xf32>
    %cst = arith.constant dense<0.000000e+00> : vector<16x32xf32>
    %2 = tpu.matmul %0, %1, %cst {dimension_numbers = #tpu.dot_dimension_numbers<[1], [0], [0], [1], [0, 0, 1, 1], [], []>} : vector<16x32xf32>, vector<32x32xf32>, vector<16x32xf32> -> vector<16x32xf32>
    %c0_3 = arith.constant 0 : index
    %c0_4 = arith.constant 0 : index
    %3 = vector.load %arg3[%c0_3, %c0_4] : memref<1x32xf32, #tpu.memory_space<vmem>>, vector<1x32xf32>
    %4 = vector.broadcast %3 : vector<1x32xf32> to vector<16x32xf32>
    %5 = arith.addf %2, %4 : vector<16x32xf32>
    %c0_5 = arith.constant 0 : index
    %c0_6 = arith.constant 0 : index
    %6 = vector.load %arg4[%c0_5, %c0_6] : memref<16x32xf32, #tpu.memory_space<vmem>>, vector<16x32xf32>
    tpu.vector_store %arg4[%c0_5, %c0_6], %5 {strides = array<i32>} : memref<16x32xf32, #tpu.memory_space<vmem>>, vector<16x32xf32>,
    return
  }
  func.func @transform_0(%arg0: i32) -> (i32, i32) {
    %c0_i32 = arith.constant 0 : i32
    %c0_i32_0 = arith.constant 0 : i32
    return %arg0, %c0_i32 : i32, i32
  }
  func.func @transform_1(%arg0: i32) -> (i32, i32) {
    %c0_i32 = arith.constant 0 : i32
    %c0_i32_0 = arith.constant 0 : i32
    %c0_i32_1 = arith.constant 0 : i32
    return %c0_i32, %c0_i32_0 : i32, i32
  }
  func.func @transform_2(%arg0: i32) -> (i32, i32) {
    %c0_i32 = arith.constant 0 : i32
    %c0_i32_0 = arith.constant 0 : i32
    %c0_i32_1 = arith.constant 0 : i32
    return %c0_i32, %c0_i32_0 : i32, i32
  }
  func.func @transform_3(%arg0: i32) -> (i32, i32) {
    %c0_i32 = arith.constant 0 : i32
    %c0_i32_0 = arith.constant 0 : i32
    return %arg0, %c0_i32 : i32, i32
  }
}

</mosaic_0001>

<llo_original>
// kernel: tpu_custom_call.1
$region0: #{tpu_custom_call.1}
  #allocation0 [shape = 'u32[]', space=smem, size = 0x4, offset = 0x4, fixed_abs, tag = 'smem constant byte address 0x4 - core index']
  #allocation1 [shape = 'u32[144,128]{1,0:T(1,128)}', space=vmem, size = 0x12000, scoped, tag = 'internal scratch']
  %s0 = inlined_call_operand.hbm [shape: f32[16,32], index: 0, kind: input, shape index: {}]
  %s1 = inlined_call_operand.hbm [shape: f32[32,32], index: 1, kind: input, shape index: {}]
  %s2 = inlined_call_operand.vmem [shape: f32[1,32], index: 2, kind: input, shape index: {}]
  %s3 = inlined_call_operand.hbm [shape: f32[16,32], index: 3, kind: output, shape index: {}]
  %s4 = sld [smem:[#allocation0]]
  $region30: #{tpu_custom_call.1} parent=0
    _
  %s6 = ssub.s32 1, %s4
  %s7 = scalar_select 0, %s6, %s4
  $region1: #{tpu_custom_call.1} parent=0
    #allocation2 [shape = 'u8[8192]{0}', space=vmem, size = 0x2000, scoped, tag = 'input window, operand 0, single buffered']
    #allocation3 [shape = 's32[1]{0}', space=sflag, size = 0x4, scoped, tag = 'scoped memory for tpu_custom_call.1']
    #allocation4 [shape = 's32[1]{0}', space=sflag, size = 0x4, scoped, tag = 'scoped memory for tpu_custom_call.1']
    #allocation5 [shape = 'u8[16384]{0}', space=vmem, size = 0x4000, scoped, tag = 'input window, operand 1, single buffered']
    #allocation6 [shape = 's32[1]{0}', space=sflag, size = 0x4, scoped, tag = 'scoped memory for tpu_custom_call.1']
    #allocation7 [shape = 'u8[8192]{0}', space=vmem, size = 0x2000, scoped, tag = 'output window, operand 0, single buffered']
    %8 = vsyncpa [#allocation3], 0
    %9 = vsyncpa [#allocation6], 0
    %10 = vsyncpa [#allocation4], 0
    // Predicated region
    $region2: #{tpu_custom_call.1} parent=1 // pred_check
      _
    $region3: #{tpu_custom_call.1} parent=1 // pred_check_branch
      %12 = sbr.rel (0) target = $region5
    $region4: #{tpu_custom_call.1} parent=1 // pred_region
      %s14 = ssub.s32 256, 256
      %15 = vsyncadd [#allocation3], %s14
      %s16 = sshll.u32 [#allocation2], 4
      %s17 = int_to_ptr.vmem [resolvable:$true] %s16
      %22 = dma.hbm_to_vmem [thread:$0]  %s0, 256, %s17, [#allocation3], 128, 128, 8
    $region5: #{tpu_custom_call.1} parent=1 // pred_fallthru
      _
    // Predicated region
    $region6: #{tpu_custom_call.1} parent=1 // pred_check
      _
    $region7: #{tpu_custom_call.1} parent=1 // pred_check_branch
      %24 = sbr.rel (0) target = $region9
    $region8: #{tpu_custom_call.1} parent=1 // pred_region
      %s26 = ssub.s32 512, 512
      %27 = vsyncadd [#allocation6], %s26
      %s28 = sshll.u32 [#allocation5], 4
      %s29 = int_to_ptr.vmem [resolvable:$true] %s28
      %34 = dma.hbm_to_vmem [thread:$0]  %s1, 512, %s29, [#allocation6], 128, 128, 8
    $region9: #{tpu_custom_call.1} parent=1 // pred_fallthru
      _
    // Predicated region
    $region10: #{tpu_custom_call.1} parent=1 // pred_check
      _
    $region11: #{tpu_custom_call.1} parent=1 // pred_check_branch
      %36 = sbr.rel (0) target = $region13
    $region12: #{tpu_custom_call.1} parent=1 // pred_region
      _
    $region13: #{tpu_custom_call.1} parent=1 // pred_fallthru
      _
    // Predicated region
    $region14: #{tpu_custom_call.1} parent=1 // pred_check
      _
    $region15: #{tpu_custom_call.1} parent=1 // pred_check_branch
      %38 = sbr.rel (0) target = $region17
    $region16: #{tpu_custom_call.1} parent=1 // pred_region
      %39 = dma.done [#allocation3], 256
    $region17: #{tpu_custom_call.1} parent=1 // pred_fallthru
      _
    // Predicated region
    $region18: #{tpu_custom_call.1} parent=1 // pred_check
      _
    $region19: #{tpu_custom_call.1} parent=1 // pred_check_branch
      %41 = sbr.rel (0) target = $region21
    $region20: #{tpu_custom_call.1} parent=1 // pred_region
      %42 = dma.done [#allocation6], 512
    $region21: #{tpu_custom_call.1} parent=1 // pred_fallthru
      _
    %v43 = vld [vmem:[#allocation2] sm:$0xff]
    %v44 = vld [vmem:[#allocation2 + $0x8] sm:$0xff]
    %v45 = vld [vmem:[#allocation5] sm:$0xff]
    %v46 = vld [vmem:[#allocation5 + $0x8] sm:$0xff]
    %v47 = vld [vmem:[#allocation5 + $0x10] sm:$0xff]
    %v48 = vld [vmem:[#allocation5 + $0x18] sm:$0xff]
    %v49 = vld [vmem:[%s2] sm:$0x1]
    %v51 = vlaneseq
    %v52 = vshrl.u32 %v51, 7
    %v53 = vsub.s32 0, %v52
    %v54 = vrot.slane %v49, %v53
    %vm56 = vcmask 261120
    %v58 = vsel %vm56, %v43, 0
    %v61 = vsel %vm56, %v44, 0
    %63 = vmatprep.subr.mxu0 0.0
    %64 = vmatpush1.msra.mxu0 0.0
    %65 = vmatprep.subr.mxu0 0.0
    %66 = vmatpush1.msra.mxu0 0.0
    %67 = vmatprep.subr.mxu0 0.0
    %68 = vmatpush1.msra.mxu0 0.0
    %69 = vmatprep.subr.mxu0 0.0
    %70 = vmatpush1.msra.mxu0 0.0
    %71 = vmatprep.subr.mxu0 0.0
    %72 = vmatpush1.msra.mxu0 0.0
    %73 = vmatprep.subr.mxu0 0.0
    %74 = vmatpush1.msra.mxu0 0.0
    %75 = vmatprep.subr.mxu0 0.0
    %76 = vmatpush1.msra.mxu0 0.0
    %77 = vmatprep.subr.mxu0 0.0
    %78 = vmatpush1.msra.mxu0 0.0
    %79 = vmatprep.subr.mxu0 0.0
    %80 = vmatpush1.msra.mxu0 0.0
    %81 = vmatprep.subr.mxu0 0.0
    %82 = vmatpush1.msra.mxu0 0.0
    %83 = vmatprep.subr.mxu0 0.0
    %84 = vmatpush1.msra.mxu0 0.0
    %85 = vmatprep.subr.mxu0 0.0
    %86 = vmatpush1.msra.mxu0 0.0
    %87 = vmatprep.subr.mxu0 0.0
    %88 = vmatpush1.msra.mxu0 %v48
    %89 = vmatprep.subr.mxu0 0.0
    %90 = vmatpush1.msra.mxu0 %v47
    %91 = vmatprep.subr.mxu0 0.0
    %92 = vmatpush1.msra.mxu0 %v46
    %93 = vmatprep.subr.mxu0 0.0
    %94 = vmatpush1.msra.mxu0 %v45
    %95 = vmatprep.subr.mxu0 0.0
    %96 = vmatpush2.msra.mxu0 0.0
    %97 = vmatprep.subr.mxu0 0.0
    %98 = vmatpush2.msra.mxu0 0.0
    %99 = vmatprep.subr.mxu0 0.0
    %100 = vmatpush2.msra.mxu0 0.0
    %101 = vmatprep.subr.mxu0 0.0
    %102 = vmatpush2.msra.mxu0 0.0
    %103 = vmatprep.subr.mxu0 0.0
    %104 = vmatpush2.msra.mxu0 0.0
    %105 = vmatprep.subr.mxu0 0.0
    %106 = vmatpush2.msra.mxu0 0.0
    %107 = vmatprep.subr.mxu0 0.0
    %108 = vmatpush2.msra.mxu0 0.0
    %109 = vmatprep.subr.mxu0 0.0
    %110 = vmatpush2.msra.mxu0 0.0
    %111 = vmatprep.subr.mxu0 0.0
    %112 = vmatpush2.msra.mxu0 0.0
    %113 = vmatprep.subr.mxu0 0.0
    %114 = vmatpush2.msra.mxu0 0.0
    %115 = vmatprep.subr.mxu0 0.0
    %116 = vmatpush2.msra.mxu0 0.0
    %117 = vmatprep.subr.mxu0 0.0
    %118 = vmatpush2.msra.mxu0 0.0
    %119 = vmatprep.subr.mxu0 0.0
    %120 = vmatpush2.msra.mxu0 0.0
    %121 = vmatprep.subr.mxu0 0.0
    %122 = vmatpush2.msra.mxu0 0.0
    %123 = vmatprep.subr.mxu0 0.0
    %124 = vmatpush2.msra.mxu0 0.0
    %125 = vmatprep.subr.mxu0 0.0
    %126 = vmatpush2.msra.mxu0 0.0
    %127 = vmatprep.mubr.f32.mxu0 0.0
    %128 = vmatmul.mubr.f32.gmra.mxu0 %v58
    %v129 = vpop.f32.mrf.mxu0
    %v130 = vadd.f32 %v54, %v129
    %v131 = vpop.f32.mrf.mxu0
    %132 = vmatprep.mubr.f32.mxu0 0.0
    %133 = vmatmul.mubr.f32.gmra.mxu0 %v61
    %v134 = vpop.f32.mrf.mxu0
    %v135 = vadd.f32 %v54, %v134
    %v136 = vpop.f32.mrf.mxu0
    %137 = vdwg.mxu0
    %138 = vst.msk [vmem:[#allocation7] sm:$0xff] %vm56, %v130
    %139 = vst.msk [vmem:[#allocation7 + $0x8] sm:$0xff] %vm56, %v135
    // Predicated region
    $region22: #{tpu_custom_call.1} parent=1 // pred_check
      _
    $region23: #{tpu_custom_call.1} parent=1 // pred_check_branch
      %141 = sbr.rel (0) target = $region25
    $region24: #{tpu_custom_call.1} parent=1 // pred_region
      %s143 = ssub.s32 256, 256
      %144 = vsyncadd [#allocation4], %s143
      %s145 = sshll.u32 [#allocation7], 4
      %s146 = int_to_ptr.vmem [resolvable:$true] %s145
      %151 = dma.vmem_to_hbm [thread:$0]  %s146, 256, %s3, [#allocation4], 128, 128, 8
    $region25: #{tpu_custom_call.1} parent=1 // pred_fallthru
      _
    // Predicated region
    $region26: #{tpu_custom_call.1} parent=1 // pred_check
      _
    $region27: #{tpu_custom_call.1} parent=1 // pred_check_branch
      %153 = sbr.rel (0) target = $region29
    $region28: #{tpu_custom_call.1} parent=1 // pred_region
      %154 = dma.done [#allocation4], 256
    $region29: #{tpu_custom_call.1} parent=1 // pred_fallthru
      _
    %155 = vsyncpa [#allocation3], 1
    %156 = vsyncpa [#allocation6], 1
    %157 = vsyncpa [#allocation4], 1

</llo_original>
